<compile_context>
chip_gen: v5e
topology: v5e:2x2
jax: 0.10.0
libtpu: 0.0.40
codegen_flags: <defaults>
</compile_context>

<pallas_src>
import jax
import jax.numpy as jnp
from jax.experimental import pallas as pl
from jax.experimental.pallas import tpu as pltpu


# ----------------------------------------------------------------------------
# Kernels
# ----------------------------------------------------------------------------

def _selected_member_kernel(idx_ref, x_ref, w_ref, b_ref, o_ref):
    # idx_ref : SMEM scalar-prefetch ref, shape (1,) int32 (selects the group)
    # x_ref   : (B, D_in)        VMEM  f32
    # w_ref   : (1, D_in, D_out) VMEM  bf16 (idx-selected group's weight block)
    # b_ref   : (1, 1, D_out)    VMEM  f32  (idx-selected group's bias block)
    # o_ref   : (B, D_out)       VMEM  f32
    x_bf = x_ref[...].astype(jnp.bfloat16)
    acc = jnp.dot(x_bf, w_ref[0], preferred_element_type=jnp.float32)
    o_ref[...] = (acc + b_ref[0]).astype(o_ref.dtype)


def _all_members_kernel(x_ref, w_ref, b_ref, o_ref):
    # Single grid step: one matmul covers every group member.
    # x_ref : (B, D_in)         VMEM f32
    # w_ref : (D_in, G*D_out)   VMEM bf16  (pre-fused weight slab)
    # b_ref : (1, G*D_out)      VMEM f32   (pre-fused bias slab, one DMA)
    # o_ref : (B, G*D_out)      VMEM f32   (wide lane-dense output)
    x_bf = x_ref[...].astype(jnp.bfloat16)
    acc = jnp.dot(x_bf, w_ref[...], preferred_element_type=jnp.float32)
    o_ref[...] = (acc + b_ref[...]).astype(o_ref.dtype)


def _batched_selected_kernel(idx_ref, x_ref, w_ref, b_ref, o_ref):
    # grid=(R,): request r uses its own x block and the idx[r]-selected W/b.
    # x_ref : (1, B, D_in)       VMEM f32
    # w_ref : (1, D_in, D_out)   VMEM bf16
    # b_ref : (1, 1, D_out)      VMEM f32
    # o_ref : (1, B, D_out)      VMEM f32
    x_bf = x_ref[0].astype(jnp.bfloat16)
    acc = jnp.dot(x_bf, w_ref[0], preferred_element_type=jnp.float32)
    o_ref[0] = (acc + b_ref[0]).astype(o_ref.dtype)


# ----------------------------------------------------------------------------
# jitted call paths
# ----------------------------------------------------------------------------

@jax.jit
def _forward_selected(idx, x, weights, biases):
    """y = x @ W[idx] + b[idx]; idx selected in-kernel via scalar prefetch."""
    B, D_in = x.shape
    G, _, D_out = weights.shape
    idx_arr = jnp.asarray(idx, dtype=jnp.int32).reshape((1,))

    def _clamp(g):
        # Guard against OOB group index -> never issue an out-of-range DMA.
        return jnp.minimum(jnp.maximum(g, 0), G - 1)

    grid_spec = pltpu.PrefetchScalarGridSpec(
        num_scalar_prefetch=1,
        grid=(1,),
        in_specs=[
            pl.BlockSpec((B, D_in), lambda i, idx_ref: (0, 0)),
            pl.BlockSpec((1, D_in, D_out),
                         lambda i, idx_ref: (_clamp(idx_ref[0]), 0, 0)),
            pl.BlockSpec((1, 1, D_out),
                         lambda i, idx_ref: (_clamp(idx_ref[0]), 0, 0)),
        ],
        out_specs=pl.BlockSpec((B, D_out), lambda i, idx_ref: (0, 0)),
    )
    return pl.pallas_call(
        _selected_member_kernel,
        out_shape=jax.ShapeDtypeStruct((B, D_out), x.dtype),
        grid_spec=grid_spec,
        compiler_params=pltpu.CompilerParams(
            dimension_semantics=("arbitrary",)),
    )(idx_arr, x, weights, biases)


@jax.jit
def _forward_all(x, w_slab, b_slab):
    """Run every group member as one fused (B,D_in)@(D_in,G*D_out) matmul."""
    B, D_in = x.shape
    _, GN = w_slab.shape

    grid_spec = pltpu.PrefetchScalarGridSpec(
        num_scalar_prefetch=0,
        grid=(1,),
        in_specs=[
            pl.BlockSpec((B, D_in), lambda i: (0, 0)),
            pl.BlockSpec((D_in, GN), lambda i: (0, 0)),
            pl.BlockSpec((1, GN), lambda i: (0, 0)),
        ],
        out_specs=pl.BlockSpec((B, GN), lambda i: (0, 0)),
    )
    return pl.pallas_call(
        _all_members_kernel,
        out_shape=jax.ShapeDtypeStruct((B, GN), x.dtype),
        grid_spec=grid_spec,
        compiler_params=pltpu.CompilerParams(
            dimension_semantics=("arbitrary",)),
    )(x, w_slab, b_slab)


@jax.jit
def _forward_batched(idxs, xs, weights, biases):
    """R requests in one pallas_call: out[r] = xs[r] @ W[idxs[r]] + b[idxs[r]]."""
    R, B, D_in = xs.shape
    G, _, D_out = weights.shape
    idxs = idxs.astype(jnp.int32)

    def _clamp(g):
        return jnp.minimum(jnp.maximum(g, 0), G - 1)

    grid_spec = pltpu.PrefetchScalarGridSpec(
        num_scalar_prefetch=1,
        grid=(R,),
        in_specs=[
            pl.BlockSpec((1, B, D_in), lambda r, idx_ref: (r, 0, 0)),
            pl.BlockSpec((1, D_in, D_out),
                         lambda r, idx_ref: (_clamp(idx_ref[r]), 0, 0)),
            pl.BlockSpec((1, 1, D_out),
                         lambda r, idx_ref: (_clamp(idx_ref[r]), 0, 0)),
        ],
        out_specs=pl.BlockSpec((1, B, D_out), lambda r, idx_ref: (r, 0, 0)),
    )
    return pl.pallas_call(
        _batched_selected_kernel,
        out_shape=jax.ShapeDtypeStruct((R, B, D_out), xs.dtype),
        grid_spec=grid_spec,
        compiler_params=pltpu.CompilerParams(
            # each r writes its own output block -> v7x can split across TCs
            dimension_semantics=("parallel",)),
    )(idxs, xs, weights, biases)


# ----------------------------------------------------------------------------
# Module wrapper
# ----------------------------------------------------------------------------

class GroupedPallasModule:
    """JAX/Pallas analogue of GroupedNNTrainableModule."""

    def __init__(self, weights, biases, param_dtype=jnp.bfloat16):
        # weights: (G, D_in, D_out), biases: (G, 1, D_out)
        assert weights.ndim == 3 and biases.ndim == 3
        G, D_in, D_out = weights.shape
        assert biases.shape == (G, 1, D_out)
        self.num_groups = G
        # bf16 weights: MXU-native input, halves weight HBM->VMEM traffic.
        self.weights = weights.astype(param_dtype)
        # Bias add stays f32.
        self.biases = biases.astype(jnp.float32)
        # Pre-fused slabs for the idx=None path (built once at init):
        #   w_slab[k, g*D_out + n] = W[g, k, n]   -> (D_in, G*D_out)
        #   b_slab[0, g*D_out + n] = b[g, 0, n]   -> (1, G*D_out)
        self.w_slab = jnp.transpose(self.weights, (1, 0, 2)).reshape(
            D_in, G * D_out)
        self.b_slab = self.biases.reshape(1, G * D_out)

    def __call__(self, x, idx=None):
        # TODO(synk): cache-dict bookkeeping (reset_loss_dict/reset_metric_dict)
        # of NNTrainableModule has no device-side equivalent; omitted.
        if idx is None:
            # PyTorch: call every member module, discard results, return None.
            # One fused matmul over all G members, single launch, single DMA set.
            _ = _forward_all(x, self.w_slab, self.b_slab)
            return None
        return _forward_selected(jnp.int32(idx), x, self.weights, self.biases)

    def forward_batched(self, xs, idxs):
        """Perf extension: run R (x, idx) requests in one pipelined kernel.

        out[r] == grouped_modules[idxs[r]](xs[r]).
        """
        return _forward_batched(jnp.asarray(idxs, dtype=jnp.int32), xs,
                                self.weights, self.biases)


# ----------------------------------------------------------------------------
# Demo / correctness check
# ----------------------------------------------------------------------------

if __name__ == "__main__":
    key = jax.random.PRNGKey(0)
    k_x, k_w, k_b, k_xb, k_i = jax.random.split(key, 5)

    # Lane-dense, MXU-friendly small shapes: B = one sublane tile,
    # D_in = D_out = one full 128-lane tile, G = 4 groups.
    G, B, D_in, D_out = 4, 8, 128, 128
    x = jax.random.normal(k_x, (B, D_in), dtype=jnp.float32)
    weights = jax.random.normal(k_w, (G, D_in, D_out), dtype=jnp.float32) * 0.1
    biases = jax.random.normal(k_b, (G, 1, D_out), dtype=jnp.float32) * 0.1

    module = GroupedPallasModule(weights, biases)

    # Reference in the kernel's numerics: bf16 inputs, f32 accumulate.
    w_f32 = module.weights.astype(jnp.float32)          # bf16-rounded weights
    x_bf = x.astype(jnp.bfloat16).astype(jnp.float32)   # bf16-rounded x

    def ref_for(g, xf):
        return jnp.dot(xf, w_f32[g],
                       precision=jax.lax.Precision.HIGHEST) + biases[g, 0]

    # idx given -> returns grouped_modules[idx](x)
    sel = 1
    y1 = jax.block_until_ready(module(x, idx=sel))
    assert y1.shape == (B, D_out)
    assert jnp.allclose(y1, ref_for(sel, x_bf), atol=2e-3, rtol=2e-3), \
        "mismatch vs reference (idx=1)"

    # second member exercises the cached executable / dynamic idx
    y2 = jax.block_until_ready(module(x, idx=3))
    assert jnp.allclose(y2, ref_for(3, x_bf), atol=2e-3, rtol=2e-3), \
        "mismatch vs reference (idx=3)"

    # idx=None -> runs every member in one fused kernel, returns None
    assert module(x, idx=None) is None
    # (also verify the fused slab path numerically)
    y_all = jax.block_until_ready(
        _forward_all(x, module.w_slab, module.b_slab))
    for g in range(G):
        assert jnp.allclose(y_all[:, g * D_out:(g + 1) * D_out],
                            ref_for(g, x_bf), atol=2e-3, rtol=2e-3), \
            f"mismatch vs reference (fused, group {g})"

    # batched selected path: R requests, one pallas_call, pipelined W DMAs
    R = 6
    xs = jax.random.normal(k_xb, (R, B, D_in), dtype=jnp.float32)
    idxs = jax.random.randint(k_i, (R,), 0, G, dtype=jnp.int32)
    yb = jax.block_until_ready(module.forward_batched(xs, idxs))
    xs_bf = xs.astype(jnp.bfloat16).astype(jnp.float32)
    for r in range(R):
        g = int(idxs[r])
        assert jnp.allclose(yb[r], ref_for(g, xs_bf[r]),
                            atol=2e-3, rtol=2e-3), \
            f"mismatch vs reference (batched, request {r})"

    print("KERNEL_OK")
</pallas_src>

<mosaic_0001>
module attributes {stable_mosaic.version = 11 : i64} {
  func.func @_selected_member_kernel(%arg0: i32, %arg1: memref<1xi32, #tpu.memory_space<smem>>, %arg2: memref<8x128xf32, #tpu.memory_space<vmem>>, %arg3: memref<1x128x128xbf16, #tpu.memory_space<vmem>>, %arg4: memref<1x1x128xf32, #tpu.memory_space<vmem>>, %arg5: memref<8x128xf32, #tpu.memory_space<vmem>>) attributes {dimension_semantics = [#tpu.dimension_semantics<arbitrary>], iteration_bounds = array<i64: 1>, scalar_prefetch = 1 : i64, scratch_operands = 0 : i64, tpu.core_type = #tpu.core_type<tc>, window_params = [{pipeline_mode = #tpu.pipeline_mode<synchronous>, transform_indices = @transform_0, window_bounds = array<i64: 8, 128>}, {transform_indices = @transform_1, window_bounds = array<i64: 1, 128, 128>}, {transform_indices = @transform_2, window_bounds = array<i64: 1, 1, 128>}, {pipeline_mode = #tpu.pipeline_mode<synchronous>, transform_indices = @transform_3, window_bounds = array<i64: 8, 128>}]} {
    %c0 = arith.constant 0 : index
    %c0_0 = arith.constant 0 : index
    %0 = vector.load %arg2[%c0, %c0_0] : memref<8x128xf32, #tpu.memory_space<vmem>>, vector<8x128xf32>
    %1 = arith.truncf %0 : vector<8x128xf32> to vector<8x128xbf16>
    %c0_1 = arith.constant 0 : index
    %c0_2 = arith.constant 0 : index
    %c0_3 = arith.constant 0 : index
    %2 = vector.load %arg3[%c0_1, %c0_2, %c0_3] : memref<1x128x128xbf16, #tpu.memory_space<vmem>>, vector<1x128x128xbf16>
    %3 = vector.shape_cast %2 : vector<1x128x128xbf16> to vector<128x128xbf16>
    %cst = arith.constant dense<0.000000e+00> : vector<8x128xf32>
    %4 = tpu.matmul %1, %3, %cst {dimension_numbers = #tpu.dot_dimension_numbers<[1], [0], [0], [1], [0, 0, 1, 1], [], []>} : vector<8x128xbf16>, vector<128x128xbf16>, vector<8x128xf32> -> vector<8x128xf32>
    %c0_4 = arith.constant 0 : index
    %c0_5 = arith.constant 0 : index
    %c0_6 = arith.constant 0 : index
    %5 = vector.load %arg4[%c0_4, %c0_5, %c0_6] : memref<1x1x128xf32, #tpu.memory_space<vmem>>, vector<1x1x128xf32>
    %6 = vector.shape_cast %5 : vector<1x1x128xf32> to vector<1x128xf32>
    %7 = vector.broadcast %6 : vector<1x128xf32> to vector<8x128xf32>
    %8 = arith.addf %4, %7 : vector<8x128xf32>
    %c0_7 = arith.constant 0 : index
    %c0_8 = arith.constant 0 : index
    %9 = vector.load %arg5[%c0_7, %c0_8] : memref<8x128xf32, #tpu.memory_space<vmem>>, vector<8x128xf32>
    tpu.vector_store %arg5[%c0_7, %c0_8], %8 {strides = array<i32>} : memref<8x128xf32, #tpu.memory_space<vmem>>, vector<8x128xf32>,
    return
  }
  func.func @transform_0(%arg0: i32, %arg1: memref<1xi32, #tpu.memory_space<smem>>) -> (i32, i32) {
    %c0_i32 = arith.constant 0 : i32
    %c0_i32_0 = arith.constant 0 : i32
    %c0_i32_1 = arith.constant 0 : i32
    return %c0_i32, %c0_i32_0 : i32, i32
  }
  func.func @transform_1(%arg0: i32, %arg1: memref<1xi32, #tpu.memory_space<smem>>) -> (i32, i32, i32) {
    %c0 = arith.constant 0 : index
    %0 = memref.load %arg1[%c0] : memref<1xi32, #tpu.memory_space<smem>>
    %c0_i32 = arith.constant 0 : i32
    %1 = arith.maxsi %0, %c0_i32 : i32
    %c3_i32 = arith.constant 3 : i32
    %2 = arith.minsi %1, %c3_i32 : i32
    %c0_i32_0 = arith.constant 0 : i32
    %c0_i32_1 = arith.constant 0 : i32
    %c0_i32_2 = arith.constant 0 : i32
    return %2, %c0_i32_0, %c0_i32_1 : i32, i32, i32
  }
  func.func @transform_2(%arg0: i32, %arg1: memref<1xi32, #tpu.memory_space<smem>>) -> (i32, i32, i32) {
    %c0 = arith.constant 0 : index
    %0 = memref.load %arg1[%c0] : memref<1xi32, #tpu.memory_space<smem>>
    %c0_i32 = arith.constant 0 : i32
    %1 = arith.maxsi %0, %c0_i32 : i32
    %c3_i32 = arith.constant 3 : i32
    %2 = arith.minsi %1, %c3_i32 : i32
    %c0_i32_0 = arith.constant 0 : i32
    %c0_i32_1 = arith.constant 0 : i32
    %c0_i32_2 = arith.constant 0 : i32
    return %2, %c0_i32_0, %c0_i32_1 : i32, i32, i32
  }
  func.func @transform_3(%arg0: i32, %arg1: memref<1xi32, #tpu.memory_space<smem>>) -> (i32, i32) {
    %c0_i32 = arith.constant 0 : i32
    %c0_i32_0 = arith.constant 0 : i32
    %c0_i32_1 = arith.constant 0 : i32
    return %c0_i32, %c0_i32_0 : i32, i32
  }
}

</mosaic_0001>

<llo_original>
// kernel: _forward_selected.1
$region0: #{_forward_selected.1}
  #allocation0 [shape = 'u32[]', space=smem, size = 0x4, offset = 0x4, fixed_abs, tag = 'smem constant byte address 0x4 - core index']
  #allocation1 [shape = 'u32[72,128]{1,0:T(1,128)}', space=vmem, size = 0x9000, scoped, tag = 'internal scratch']
  #allocation2 [shape = 's32[1]{0}', space=sflag, size = 0x4, scoped, tag = 'scoped memory for _forward_selected.1']
  #allocation3 [shape = 's32[1]{0:T(128)S(6)}', space=smem, size = 0x200, scoped, tag = 'prefetched SMEM operand 0']
  %s0 = inlined_call_operand.<no memory space> [shape: s32[1], index: 0, kind: input, shape index: {}]
  %s1 = inlined_call_operand.hbm [shape: f32[8,128], index: 1, kind: input, shape index: {}]
  %s2 = inlined_call_operand.hbm [shape: bf16[4,128,128], index: 2, kind: input, shape index: {}]
  %s3 = inlined_call_operand.vmem [shape: f32[4,1,128], index: 3, kind: input, shape index: {}]
  %s4 = inlined_call_operand.hbm [shape: f32[8,128], index: 4, kind: output, shape index: {}]
  %s5 = sld [smem:[#allocation0]]
  $region30: #{_forward_selected.1} parent=0
    _
  %s7 = ssub.s32 1, %s5
  %s8 = scalar_select 0, %s7, %s5
  %9 = sst [smem:[#allocation3]] %s0
  $region1: #{_forward_selected.1} parent=0
    #allocation4 [shape = 'u8[4096]{0}', space=vmem, size = 0x1000, scoped, tag = 'input window, operand 1, single buffered']
    #allocation5 [shape = 's32[1]{0}', space=sflag, size = 0x4, scoped, tag = 'scoped memory for _forward_selected.1']
    #allocation6 [shape = 's32[1]{0}', space=sflag, size = 0x4, scoped, tag = 'scoped memory for _forward_selected.1']
    #allocation7 [shape = 'u8[32768]{0}', space=vmem, size = 0x8000, scoped, tag = 'input window, operand 2, single buffered']
    #allocation8 [shape = 's32[1]{0}', space=sflag, size = 0x4, scoped, tag = 'scoped memory for _forward_selected.1']
    #allocation9 [shape = 'u8[4096]{0}', space=vmem, size = 0x1000, scoped, tag = 'output window, operand 0, single buffered']
    %10 = vsyncpa [#allocation5], 0
    %11 = vsyncpa [#allocation8], 0
    %12 = vsyncpa [#allocation6], 0
    // Predicated region
    $region2: #{_forward_selected.1} parent=1 // pred_check
      _
    $region3: #{_forward_selected.1} parent=1 // pred_check_branch
      %14 = sbr.rel (0) target = $region5
    $region4: #{_forward_selected.1} parent=1 // pred_region
      %16 = vsyncadd [#allocation5], 0
      %s18 = sshll.u32 %s1, 4
      %s19 = int_to_ptr.hbm [resolvable:$true] %s18
      %s20 = sshll.u32 [#allocation4], 4
      %s21 = int_to_ptr.vmem [resolvable:$true] %s20
      %23 = dma.hbm_to_vmem [thread:$0]  %s19, 128, %s21, [#allocation5]
    $region5: #{_forward_selected.1} parent=1 // pred_fallthru
      _
    // Predicated region
    $region6: #{_forward_selected.1} parent=1 // pred_check
      _
    $region7: #{_forward_selected.1} parent=1 // pred_check_branch
      %25 = sbr.rel (0) target = $region9
    $region8: #{_forward_selected.1} parent=1 // pred_region
      %s26 = sld [smem:[#allocation3]]
      %p27 = scmp.gt.s32.totalorder %s26, 0
      %s28 = scalar_select %p27, %s26, 0
      %p29 = scmp.lt.s32.totalorder %s28, 3
      %s30 = scalar_select %p29, %s28, 3
      %32 = vsyncadd [#allocation8], 0
      %s33 = smul.addr %s30, 16
      %s34 = smul.addr %s33, 4
      %s35 = scalar_lea.hbm %s2, %s34
      %s36 = sshll.u32 %s35, 4
      %s37 = int_to_ptr.hbm [resolvable:$true] %s36
      %s38 = sshll.u32 [#allocation7], 4
      %s39 = int_to_ptr.vmem [resolvable:$true] %s38
      %44 = dma.hbm_to_vmem [thread:$0]  %s37, 1024, %s39, [#allocation8], 64, 64, 4
    $region9: #{_forward_selected.1} parent=1 // pred_fallthru
      _
    // Predicated region
    $region10: #{_forward_selected.1} parent=1 // pred_check
      _
    $region11: #{_forward_selected.1} parent=1 // pred_check_branch
      %46 = sbr.rel (0) target = $region13
    $region12: #{_forward_selected.1} parent=1 // pred_region
      %s47 = sld [smem:[#allocation3]]
      %p48 = scmp.gt.s32.totalorder %s47, 0
      %s49 = scalar_select %p48, %s47, 0
      %p50 = scmp.lt.s32.totalorder %s49, 3
      %s51 = scalar_select %p50, %s49, 3
      %p52 = scmp.lt.s32.totalorder %s51, 3
      %s53 = scalar_select %p52, %s51, 3
      %s54 = scalar_lea.vmem %s3, %s53
      %s55 = sld [smem:[#allocation3]]
      %p56 = scmp.gt.s32.totalorder %s55, 0
      %s57 = scalar_select %p56, %s55, 0
      %p58 = scmp.lt.s32.totalorder %s57, 3
      %s59 = scalar_select %p58, %s57, 3
    $region13: #{_forward_selected.1} parent=1 // pred_fallthru
      _
    // Predicated region
    $region14: #{_forward_selected.1} parent=1 // pred_check
      _
    $region15: #{_forward_selected.1} parent=1 // pred_check_branch
      %61 = sbr.rel (0) target = $region17
    $region16: #{_forward_selected.1} parent=1 // pred_region
      %63 = dma.done [#allocation5], 128
    $region17: #{_forward_selected.1} parent=1 // pred_fallthru
      _
    // Predicated region
    $region18: #{_forward_selected.1} parent=1 // pred_check
      _
    $region19: #{_forward_selected.1} parent=1 // pred_check_branch
      %65 = sbr.rel (0) target = $region21
    $region20: #{_forward_selected.1} parent=1 // pred_region
      %67 = dma.done [#allocation8], 1024
    $region21: #{_forward_selected.1} parent=1 // pred_fallthru
      _
    %s68 = sld [smem:[#allocation3]]
    %p69 = scmp.gt.s32.totalorder %s68, 0
    %s70 = scalar_select %p69, %s68, 0
    %p71 = scmp.lt.s32.totalorder %s70, 3
    %s72 = scalar_select %p71, %s70, 3
    %p73 = scmp.lt.s32.totalorder %s72, 3
    %s74 = scalar_select %p73, %s72, 3
    %s75 = scalar_lea.vmem %s3, %s74
    %s76 = sld [smem:[#allocation3]]
    %p77 = scmp.gt.s32.totalorder %s76, 0
    %s78 = scalar_select %p77, %s76, 0
    %p79 = scmp.lt.s32.totalorder %s78, 3
    %s80 = scalar_select %p79, %s78, 3
    %s81 = sld [smem:[#allocation3]]
    %p82 = scmp.gt.s32.totalorder %s81, 0
    %s83 = scalar_select %p82, %s81, 0
    %p84 = scmp.lt.s32.totalorder %s83, 3
    %s85 = scalar_select %p84, %s83, 3
    %p86 = scmp.lt.s32.totalorder %s85, 3
    %s87 = scalar_select %p86, %s85, 3
    %s88 = scalar_lea.vmem %s3, %s87
    %s89 = sld [smem:[#allocation3]]
    %p90 = scmp.gt.s32.totalorder %s89, 0
    %s91 = scalar_select %p90, %s89, 0
    %p92 = scmp.lt.s32.totalorder %s91, 3
    %s93 = scalar_select %p92, %s91, 3
    %v94 = vld [vmem:[#allocation4] sm:$0xff]
    %v95 = vpack.c.bf16 %v94, %v94
    %v96 = vld [vmem:[#allocation7] sm:$0xf]
    %v97 = vld [vmem:[#allocation7 + $0x4] sm:$0xf]
    %v98 = vld [vmem:[#allocation7 + $0x8] sm:$0xf]
    %v99 = vld [vmem:[#allocation7 + $0xc] sm:$0xf]
    %v100 = vld [vmem:[#allocation7 + $0x10] sm:$0xf]
    %v101 = vld [vmem:[#allocation7 + $0x14] sm:$0xf]
    %v102 = vld [vmem:[#allocation7 + $0x18] sm:$0xf]
    %v103 = vld [vmem:[#allocation7 + $0x1c] sm:$0xf]
    %v104 = vld [vmem:[#allocation7 + $0x20] sm:$0xf]
    %v105 = vld [vmem:[#allocation7 + $0x24] sm:$0xf]
    %v106 = vld [vmem:[#allocation7 + $0x28] sm:$0xf]
    %v107 = vld [vmem:[#allocation7 + $0x2c] sm:$0xf]
    %v108 = vld [vmem:[#allocation7 + $0x30] sm:$0xf]
    %v109 = vld [vmem:[#allocation7 + $0x34] sm:$0xf]
    %v110 = vld [vmem:[#allocation7 + $0x38] sm:$0xf]
    %v111 = vld [vmem:[#allocation7 + $0x3c] sm:$0xf]
    %v112 = vld [vmem:[%s88] sm:$0x1]
    %v114 = vperm.slane %v112, 0
    %v132 = vunpack.c.l.b16 %v96
    %v133 = vunpack.c.l.b16 %v97
    %v134 = vunpack.c.l.b16 %v98
    %v135 = vunpack.c.l.b16 %v99
    %v136 = vunpack.c.l.b16 %v100
    %v137 = vunpack.c.l.b16 %v101
    %v138 = vunpack.c.l.b16 %v102
    %v139 = vunpack.c.l.b16 %v103
    %v140 = vunpack.c.l.b16 %v104
    %v141 = vunpack.c.l.b16 %v105
    %v142 = vunpack.c.l.b16 %v106
    %v143 = vunpack.c.l.b16 %v107
    %v144 = vunpack.c.l.b16 %v108
    %v145 = vunpack.c.l.b16 %v109
    %v146 = vunpack.c.l.b16 %v110
    %v147 = vunpack.c.l.b16 %v111
    %v148 = vpack.c.b16 %v133, %v132
    %v149 = vpack.c.b16 %v135, %v134
    %v150 = vpack.c.b16 %v137, %v136
    %v151 = vpack.c.b16 %v139, %v138
    %v152 = vpack.c.b16 %v141, %v140
    %v153 = vpack.c.b16 %v143, %v142
    %v154 = vpack.c.b16 %v145, %v144
    %v155 = vpack.c.b16 %v147, %v146
    %164 = vmatpush.bf16.msra.mxu0 %v155
    %165 = vmatpush.bf16.msra.mxu0 %v154
    %166 = vmatpush.bf16.msra.mxu0 %v153
    %167 = vmatpush.bf16.msra.mxu0 %v152
    %168 = vmatpush.bf16.msra.mxu0 %v151
    %169 = vmatpush.bf16.msra.mxu0 %v150
    %170 = vmatpush.bf16.msra.mxu0 %v149
    %171 = vmatpush.bf16.msra.mxu0 %v148
    %172 = vmatmul.bf16.gmra.mxu0 %v95
    %v173 = vpop.f32.mrf.mxu0
    %v174 = vadd.f32 %v114, %v173
    %v175 = vpop.f32.mrf.mxu0
    %176 = vdwg.mxu0
    %177 = vst [vmem:[#allocation9] sm:$0xff] %v174
    // Predicated region
    $region22: #{_forward_selected.1} parent=1 // pred_check
      _
    $region23: #{_forward_selected.1} parent=1 // pred_check_branch
      %179 = sbr.rel (0) target = $region25
    $region24: #{_forward_selected.1} parent=1 // pred_region
      %181 = vsyncadd [#allocation6], 0
      %s183 = sshll.u32 [#allocation9], 4
      %s184 = int_to_ptr.vmem [resolvable:$true] %s183
      %s185 = sshll.u32 %s4, 4
      %s186 = int_to_ptr.hbm [resolvable:$true] %s185
      %188 = dma.vmem_to_hbm [thread:$0]  %s184, 128, %s186, [#allocation6]
    $region25: #{_forward_selected.1} parent=1 // pred_fallthru
      _
    // Predicated region
    $region26: #{_forward_selected.1} parent=1 // pred_check
      _
    $region27: #{_forward_selected.1} parent=1 // pred_check_branch
      %190 = sbr.rel (0) target = $region29
    $region28: #{_forward_selected.1} parent=1 // pred_region
      %192 = dma.done [#allocation6], 128
    $region29: #{_forward_selected.1} parent=1 // pred_fallthru
      _
    %193 = vsyncpa [#allocation5], 1
    %194 = vsyncpa [#allocation8], 1
    %195 = vsyncpa [#allocation6], 1

</llo_original>
